<compile_context>
chip_gen: v6e
topology: v6e:2x2x1
jax: 0.10.0
libtpu: 0.0.40
codegen_flags: <defaults>
</compile_context>

<pallas_src>
import jax
import jax.numpy as jnp
from jax import lax
from jax.experimental import pallas as pl
from jax.experimental.pallas import tpu as pltpu


def _round_up(n, m):
    return (n + m - 1) // m * m


def _make_adaptor_kernel(proj_dim_valid: int, proj_dim_padded: int):
    """Build the kernel body; proj_dim_* are trace-time Python ints."""
    inv_sqrt2 = 0.7071067811865476
    eps = 1e-5
    inv_d = 1.0 / float(proj_dim_valid)

    def kernel(x_ref, wp_ref, wf_ref, vec_ref, o_ref):
        # packed per-feature vectors (f32): rows = [bp, bf, gamma, beta]
        bp = vec_ref[0:1, :]
        bf = vec_ref[1:2, :]
        gamma = vec_ref[2:3, :]
        beta = vec_ref[3:4, :]

        # ---- projection: x @ Wp + bp  (MXU, bf16 inputs, f32 accumulate) ----
        projected = jnp.dot(x_ref[...], wp_ref[...],
                            preferred_element_type=jnp.float32)
        projected = projected + bp

        # ---- exact (erf) GELU, matching torch.nn.GELU() default (f32) ----
        h = 0.5 * projected * (1.0 + lax.erf(projected * inv_sqrt2))

        # ---- fc: h @ Wf + bf (cast back to matmul dtype for full MXU rate) ---
        h = jnp.dot(h.astype(wf_ref.dtype), wf_ref[...],
                    preferred_element_type=jnp.float32)
        # dropout(p=0.1) is identity in eval/inference mode; residual add
        h = h + bf + projected

        # ---- LayerNorm over the true proj_dim (padded feature cols are 0) ----
        mean = jnp.sum(h, axis=-1, keepdims=True) * inv_d
        centered = h - mean
        if proj_dim_valid < proj_dim_padded:
            # zero the padded lanes so they don't contribute to the variance
            lane = lax.broadcasted_iota(jnp.int32, h.shape, 1)
            centered = jnp.where(lane < proj_dim_valid, centered, 0.0)
        var = jnp.sum(centered * centered, axis=-1, keepdims=True) * inv_d
        # fuse gamma into the rsqrt factor
        scale = gamma * lax.rsqrt(var + eps)
        o_ref[...] = (centered * scale + beta).astype(o_ref.dtype)

    return kernel


def adaptor_forward(x, wp, bp, wf, bf, gamma, beta, *, tile_b=256, use_bf16=True):
    """Adaptor forward pass.

    x:  [B, input_dim]
    wp: [input_dim, proj_dim], bp: [proj_dim]
    wf: [proj_dim, proj_dim],  bf: [proj_dim]
    gamma, beta: [proj_dim]
    Arbitrary shapes are supported: batch and feature dims are zero-padded to
    TPU-friendly sizes and the result is sliced back.
    """
    B, input_dim = x.shape
    assert wp.shape[0] == input_dim
    proj_dim = wp.shape[1]

    d_in = _round_up(input_dim, 128)          # lane-align K of matmul 1
    d_pr = _round_up(proj_dim, 128)           # lane-align output features
    tile = min(tile_b, _round_up(B, 16))      # batch tile (sublane aligned)
    b_pad = _round_up(B, tile)

    mm_dtype = jnp.bfloat16 if use_bf16 else x.dtype

    # zero padding preserves the math (padded Wp/Wf rows & cols are zero);
    # LayerNorm over padded lanes is handled inside the kernel.
    xp = jnp.pad(x, ((0, b_pad - B), (0, d_in - input_dim))).astype(mm_dtype)
    wpp = jnp.pad(wp, ((0, d_in - input_dim), (0, d_pr - proj_dim))).astype(mm_dtype)
    wfp = jnp.pad(wf, ((0, d_pr - proj_dim), (0, d_pr - proj_dim))).astype(mm_dtype)
    # pack [bp, bf, gamma, beta] into one (4, d_pr) f32 operand
    pad_f = d_pr - proj_dim
    vec = jnp.stack([
        jnp.pad(bp.astype(jnp.float32), (0, pad_f)),
        jnp.pad(bf.astype(jnp.float32), (0, pad_f)),
        jnp.pad(gamma.astype(jnp.float32), (0, pad_f)),
        jnp.pad(beta.astype(jnp.float32), (0, pad_f)),
    ], axis=0)

    kernel = _make_adaptor_kernel(proj_dim, d_pr)
    grid = (b_pad // tile,)

    itemsize = jnp.dtype(mm_dtype).itemsize
    cost = pl.CostEstimate(
        flops=2 * b_pad * d_in * d_pr + 2 * b_pad * d_pr * d_pr
              + 12 * b_pad * d_pr,
        transcendentals=b_pad * d_pr + b_pad,
        bytes_accessed=(b_pad * d_in + d_in * d_pr + d_pr * d_pr) * itemsize
                       + 4 * d_pr * 4
                       + b_pad * d_pr * jnp.dtype(x.dtype).itemsize,
    )

    out = pl.pallas_call(
        kernel,
        out_shape=jax.ShapeDtypeStruct((b_pad, d_pr), x.dtype),
        grid_spec=pltpu.PrefetchScalarGridSpec(
            num_scalar_prefetch=0,
            grid=grid,
            in_specs=[
                pl.BlockSpec((tile, d_in), lambda i: (i, 0)),    # x tile
                pl.BlockSpec((d_in, d_pr), lambda i: (0, 0)),    # Wp (resident)
                pl.BlockSpec((d_pr, d_pr), lambda i: (0, 0)),    # Wf (resident)
                pl.BlockSpec((4, d_pr), lambda i: (0, 0)),       # bp/bf/gamma/beta
            ],
            out_specs=pl.BlockSpec((tile, d_pr), lambda i: (i, 0)),
        ),
        compiler_params=pltpu.CompilerParams(
            dimension_semantics=("parallel",),   # batch axis -> megacore shard
        ),
        cost_estimate=cost,
    )(xp, wpp, wfp, vec)

    return out[:B, :proj_dim]


def reference_forward(x, wp, bp, wf, bf, gamma, beta):
    projected = x @ wp + bp
    h = jax.nn.gelu(projected, approximate=False)
    h = h @ wf + bf
    h = h + projected
    mean = jnp.mean(h, axis=-1, keepdims=True)
    var = jnp.mean((h - mean) ** 2, axis=-1, keepdims=True)
    normed = (h - mean) / jnp.sqrt(var + 1e-5)
    return normed * gamma + beta


def _make_params(key, input_dim, proj_dim):
    kwp, kbp, kwf, kbf = jax.random.split(key, 4)
    wp = jax.random.normal(kwp, (input_dim, proj_dim), dtype=jnp.float32) * 0.05
    bp = jax.random.normal(kbp, (proj_dim,), dtype=jnp.float32) * 0.05
    wf = jax.random.normal(kwf, (proj_dim, proj_dim), dtype=jnp.float32) * 0.05
    bf = jax.random.normal(kbf, (proj_dim,), dtype=jnp.float32) * 0.05
    gamma = jnp.ones((proj_dim,), dtype=jnp.float32)
    beta = jnp.zeros((proj_dim,), dtype=jnp.float32)
    return wp, bp, wf, bf, gamma, beta


if __name__ == "__main__":
    key = jax.random.PRNGKey(0)
    k1, k2, k3, k4 = jax.random.split(key, 4)

    # ---- Case 1: small lane-aligned shapes, bf16 MXU path + f32 sanity ----
    B, input_dim, proj_dim = 128, 128, 128
    x = jax.random.normal(k1, (B, input_dim), dtype=jnp.float32)
    params = _make_params(k2, input_dim, proj_dim)
    ref = reference_forward(x, *params)

    out_bf16 = jax.block_until_ready(
        adaptor_forward(x, *params, use_bf16=True))
    assert out_bf16.shape == (B, proj_dim)
    assert jnp.allclose(out_bf16, ref, atol=5e-2, rtol=5e-2), "bf16 path mismatch"

    out_f32 = jax.block_until_ready(
        adaptor_forward(x, *params, use_bf16=False))
    assert jnp.allclose(out_f32, ref, atol=5e-4, rtol=5e-4), "f32 path mismatch"

    # ---- Case 2: unaligned small shapes -> exercises padding + masked LN ----
    Bs, in_s, pr_s = 10, 50, 40
    xs = jax.random.normal(k3, (Bs, in_s), dtype=jnp.float32)
    params_s = _make_params(k4, in_s, pr_s)
    ref_s = reference_forward(xs, *params_s)
    out_s = jax.block_until_ready(
        adaptor_forward(xs, *params_s, use_bf16=False))
    assert out_s.shape == (Bs, pr_s)
    assert jnp.allclose(out_s, ref_s, atol=5e-4, rtol=5e-4), "padded path mismatch"

    # TODO(synk): training-mode Dropout(0.1) (RNG mask) is not implemented;
    # inference-mode (identity) semantics are used, matching module.eval().
    print("KERNEL_OK")
</pallas_src>

<mosaic_0001>
module attributes {stable_mosaic.version = 11 : i64} {
  func.func @kernel(%arg0: i32, %arg1: memref<128x128xbf16, #tpu.memory_space<vmem>>, %arg2: memref<128x128xbf16, #tpu.memory_space<vmem>>, %arg3: memref<128x128xbf16, #tpu.memory_space<vmem>>, %arg4: memref<4x128xf32, #tpu.memory_space<vmem>>, %arg5: memref<128x128xf32, #tpu.memory_space<vmem>>) attributes {dimension_semantics = [#tpu.dimension_semantics<parallel>], iteration_bounds = array<i64: 1>, scalar_prefetch = 0 : i64, scratch_operands = 0 : i64, tpu.core_type = #tpu.core_type<tc>, window_params = [{transform_indices = @transform_0, window_bounds = array<i64: 128, 128>}, {pipeline_mode = #tpu.pipeline_mode<synchronous>, transform_indices = @transform_1, window_bounds = array<i64: 128, 128>}, {pipeline_mode = #tpu.pipeline_mode<synchronous>, transform_indices = @transform_2, window_bounds = array<i64: 128, 128>}, {pipeline_mode = #tpu.pipeline_mode<synchronous>, transform_indices = @transform_3, window_bounds = array<i64: 4, 128>}, {transform_indices = @transform_4, window_bounds = array<i64: 128, 128>}]} {
    %c0 = arith.constant 0 : index
    %c0_0 = arith.constant 0 : index
    %0 = vector.load %arg4[%c0, %c0_0] : memref<4x128xf32, #tpu.memory_space<vmem>>, vector<1x128xf32>
    %c1 = arith.constant 1 : index
    %c0_1 = arith.constant 0 : index
    %1 = vector.load %arg4[%c1, %c0_1] : memref<4x128xf32, #tpu.memory_space<vmem>>, vector<1x128xf32>
    %c2 = arith.constant 2 : index
    %c0_2 = arith.constant 0 : index
    %2 = vector.load %arg4[%c2, %c0_2] : memref<4x128xf32, #tpu.memory_space<vmem>>, vector<1x128xf32>
    %c3 = arith.constant 3 : index
    %c0_3 = arith.constant 0 : index
    %3 = vector.load %arg4[%c3, %c0_3] : memref<4x128xf32, #tpu.memory_space<vmem>>, vector<1x128xf32>
    %c0_4 = arith.constant 0 : index
    %c0_5 = arith.constant 0 : index
    %4 = vector.load %arg1[%c0_4, %c0_5] : memref<128x128xbf16, #tpu.memory_space<vmem>>, vector<128x128xbf16>
    %c0_6 = arith.constant 0 : index
    %c0_7 = arith.constant 0 : index
    %5 = vector.load %arg2[%c0_6, %c0_7] : memref<128x128xbf16, #tpu.memory_space<vmem>>, vector<128x128xbf16>
    %cst = arith.constant dense<0.000000e+00> : vector<128x128xf32>
    %6 = tpu.matmul %4, %5, %cst {dimension_numbers = #tpu.dot_dimension_numbers<[1], [0], [0], [1], [0, 0, 1, 1], [], []>} : vector<128x128xbf16>, vector<128x128xbf16>, vector<128x128xf32> -> vector<128x128xf32>
    %7 = vector.broadcast %0 : vector<1x128xf32> to vector<128x128xf32>
    %8 = arith.addf %6, %7 : vector<128x128xf32>
    %cst_8 = arith.constant 5.000000e-01 : f32
    %9 = vector.broadcast %cst_8 : f32 to vector<128x128xf32>
    %10 = arith.mulf %9, %8 : vector<128x128xf32>
    %cst_9 = arith.constant 0.707106769 : f32
    %11 = vector.broadcast %cst_9 : f32 to vector<128x128xf32>
    %12 = arith.mulf %8, %11 : vector<128x128xf32>
    %13 = math.erf %12 : vector<128x128xf32>
    %cst_10 = arith.constant 1.000000e+00 : f32
    %14 = vector.broadcast %cst_10 : f32 to vector<128x128xf32>
    %15 = arith.addf %14, %13 : vector<128x128xf32>
    %16 = arith.mulf %10, %15 : vector<128x128xf32>
    %17 = arith.truncf %16 : vector<128x128xf32> to vector<128x128xbf16>
    %c0_11 = arith.constant 0 : index
    %c0_12 = arith.constant 0 : index
    %18 = vector.load %arg3[%c0_11, %c0_12] : memref<128x128xbf16, #tpu.memory_space<vmem>>, vector<128x128xbf16>
    %cst_13 = arith.constant dense<0.000000e+00> : vector<128x128xf32>
    %19 = tpu.matmul %17, %18, %cst_13 {dimension_numbers = #tpu.dot_dimension_numbers<[1], [0], [0], [1], [0, 0, 1, 1], [], []>} : vector<128x128xbf16>, vector<128x128xbf16>, vector<128x128xf32> -> vector<128x128xf32>
    %20 = vector.broadcast %1 : vector<1x128xf32> to vector<128x128xf32>
    %21 = arith.addf %19, %20 : vector<128x128xf32>
    %22 = arith.addf %21, %8 : vector<128x128xf32>
    %cst_14 = arith.constant dense<0.000000e+00> : vector<128xf32>
    %23 = vector.multi_reduction <add>, %22, %cst_14 [1] : vector<128x128xf32> to vector<128xf32>
    %24 = vector.shape_cast %23 : vector<128xf32> to vector<128x1xf32>
    %cst_15 = arith.constant 7.812500e-03 : f32
    %25 = vector.broadcast %cst_15 : f32 to vector<128x1xf32>
    %26 = arith.mulf %24, %25 : vector<128x1xf32>
    %27 = vector.broadcast %26 : vector<128x1xf32> to vector<128x128xf32>
    %28 = arith.subf %22, %27 : vector<128x128xf32>
    %29 = arith.mulf %28, %28 : vector<128x128xf32>
    %cst_16 = arith.constant dense<0.000000e+00> : vector<128xf32>
    %30 = vector.multi_reduction <add>, %29, %cst_16 [1] : vector<128x128xf32> to vector<128xf32>
    %31 = vector.shape_cast %30 : vector<128xf32> to vector<128x1xf32>
    %cst_17 = arith.constant 7.812500e-03 : f32
    %32 = vector.broadcast %cst_17 : f32 to vector<128x1xf32>
    %33 = arith.mulf %31, %32 : vector<128x1xf32>
    %cst_18 = arith.constant 9.99999974E-6 : f32
    %34 = vector.broadcast %cst_18 : f32 to vector<128x1xf32>
    %35 = arith.addf %33, %34 : vector<128x1xf32>
    %36 = math.rsqrt %35 : vector<128x1xf32>
    %37 = vector.broadcast %2 : vector<1x128xf32> to vector<128x128xf32>
    %38 = vector.broadcast %36 : vector<128x1xf32> to vector<128x128xf32>
    %39 = arith.mulf %37, %38 : vector<128x128xf32>
    %40 = arith.mulf %28, %39 : vector<128x128xf32>
    %41 = vector.broadcast %3 : vector<1x128xf32> to vector<128x128xf32>
    %42 = arith.addf %40, %41 : vector<128x128xf32>
    %c0_19 = arith.constant 0 : index
    %c0_20 = arith.constant 0 : index
    %43 = vector.load %arg5[%c0_19, %c0_20] : memref<128x128xf32, #tpu.memory_space<vmem>>, vector<128x128xf32>
    tpu.vector_store %arg5[%c0_19, %c0_20], %42 {strides = array<i32>} : memref<128x128xf32, #tpu.memory_space<vmem>>, vector<128x128xf32>,
    return
  }
  func.func @transform_0(%arg0: i32) -> (i32, i32) {
    %c0_i32 = arith.constant 0 : i32
    %c0_i32_0 = arith.constant 0 : i32
    return %arg0, %c0_i32 : i32, i32
  }
  func.func @transform_1(%arg0: i32) -> (i32, i32) {
    %c0_i32 = arith.constant 0 : i32
    %c0_i32_0 = arith.constant 0 : i32
    %c0_i32_1 = arith.constant 0 : i32
    return %c0_i32, %c0_i32_0 : i32, i32
  }
  func.func @transform_2(%arg0: i32) -> (i32, i32) {
    %c0_i32 = arith.constant 0 : i32
    %c0_i32_0 = arith.constant 0 : i32
    %c0_i32_1 = arith.constant 0 : i32
    return %c0_i32, %c0_i32_0 : i32, i32
  }
  func.func @transform_3(%arg0: i32) -> (i32, i32) {
    %c0_i32 = arith.constant 0 : i32
    %c0_i32_0 = arith.constant 0 : i32
    %c0_i32_1 = arith.constant 0 : i32
    return %c0_i32, %c0_i32_0 : i32, i32
  }
  func.func @transform_4(%arg0: i32) -> (i32, i32) {
    %c0_i32 = arith.constant 0 : i32
    %c0_i32_0 = arith.constant 0 : i32
    return %arg0, %c0_i32 : i32, i32
  }
}

</mosaic_0001>

<llo_original>
// kernel: tpu_custom_call.1
$region0: #{tpu_custom_call.1}
  #allocation0 [shape = 'u32[]', space=smem, size = 0x4, offset = 0x4, fixed_abs, tag = 'smem constant byte address 0x4 - core index']
  #allocation1 [shape = 'u32[144,128]{1,0:T(1,128)}', space=vmem, size = 0x12000, scoped, tag = 'internal scratch']
  %s0 = inlined_call_operand.hbm [shape: bf16[128,128], index: 0, kind: input, shape index: {}]
  %s1 = inlined_call_operand.hbm [shape: bf16[128,128], index: 1, kind: input, shape index: {}]
  %s2 = inlined_call_operand.hbm [shape: bf16[128,128], index: 2, kind: input, shape index: {}]
  %s3 = inlined_call_operand.vmem [shape: f32[4,128], index: 3, kind: input, shape index: {}]
  %s4 = inlined_call_operand.hbm [shape: f32[128,128], index: 4, kind: output, shape index: {}]
  %s5 = sld [smem:[#allocation0]]
  $region38: #{tpu_custom_call.1} parent=0
    _
  %s7 = ssub.s32 1, %s5
  %s8 = scalar_select 0, %s7, %s5
  $region1: #{tpu_custom_call.1} parent=0
    #allocation2 [shape = 'u8[32768]{0}', space=vmem, size = 0x8000, scoped, tag = 'input window, operand 0, single buffered']
    #allocation3 [shape = 's32[1]{0}', space=sflag, size = 0x4, scoped, tag = 'scoped memory for tpu_custom_call.1']
    #allocation4 [shape = 's32[1]{0}', space=sflag, size = 0x4, scoped, tag = 'scoped memory for tpu_custom_call.1']
    #allocation5 [shape = 'u8[32768]{0}', space=vmem, size = 0x8000, scoped, tag = 'input window, operand 1, single buffered']
    #allocation6 [shape = 's32[1]{0}', space=sflag, size = 0x4, scoped, tag = 'scoped memory for tpu_custom_call.1']
    #allocation7 [shape = 'u8[32768]{0}', space=vmem, size = 0x8000, scoped, tag = 'input window, operand 2, single buffered']
    #allocation8 [shape = 'u8[65536]{0}', space=vmem, size = 0x10000, scoped, tag = 'output window, operand 0, single buffered']
    %9 = vsyncpa [#allocation3], 0
    %10 = vsyncpa [#allocation6], 0
    %11 = vsyncpa [#allocation4], 0
    // Predicated region
    $region2: #{tpu_custom_call.1} parent=1 // pred_check
      _
    $region3: #{tpu_custom_call.1} parent=1 // pred_check_branch
      %13 = sbr.rel (0) target = $region5
    $region4: #{tpu_custom_call.1} parent=1 // pred_region
      %s15 = ssub.s32 1024, 1024
      %16 = vsyncadd [#allocation3], %s15
      %s17 = sshll.u32 [#allocation2], 4
      %s18 = int_to_ptr.vmem [resolvable:$true] %s17
      %23 = dma.hbm_to_vmem [thread:$0]  %s0, 1024, %s18, [#allocation3], 64, 64, 4
    $region5: #{tpu_custom_call.1} parent=1 // pred_fallthru
      _
    // Predicated region
    $region6: #{tpu_custom_call.1} parent=1 // pred_check
      _
    $region7: #{tpu_custom_call.1} parent=1 // pred_check_branch
      %25 = sbr.rel (0) target = $region9
    $region8: #{tpu_custom_call.1} parent=1 // pred_region
      %s27 = ssub.s32 1024, 1024
      %28 = vsyncadd [#allocation6], %s27
      %s29 = sshll.u32 [#allocation5], 4
      %s30 = int_to_ptr.vmem [resolvable:$true] %s29
      %35 = dma.hbm_to_vmem [thread:$0]  %s1, 1024, %s30, [#allocation6], 64, 64, 4
    $region9: #{tpu_custom_call.1} parent=1 // pred_fallthru
      _
    // Predicated region
    $region10: #{tpu_custom_call.1} parent=1 // pred_check
      _
    $region11: #{tpu_custom_call.1} parent=1 // pred_check_branch
      %37 = sbr.rel (0) target = $region13
    $region12: #{tpu_custom_call.1} parent=1 // pred_region
      %s39 = ssub.s32 1024, 1024
      %40 = vsyncadd [#allocation6], %s39
      %s41 = sshll.u32 [#allocation7], 4
      %s42 = int_to_ptr.vmem [resolvable:$true] %s41
      %47 = dma.hbm_to_vmem [thread:$0]  %s2, 1024, %s42, [#allocation6], 64, 64, 4
    $region13: #{tpu_custom_call.1} parent=1 // pred_fallthru
      _
    // Predicated region
    $region14: #{tpu_custom_call.1} parent=1 // pred_check
      _
    $region15: #{tpu_custom_call.1} parent=1 // pred_check_branch
      %49 = sbr.rel (0) target = $region17
    $region16: #{tpu_custom_call.1} parent=1 // pred_region
      _
    $region17: #{tpu_custom_call.1} parent=1 // pred_fallthru
      _
    // Predicated region
    $region18: #{tpu_custom_call.1} parent=1 // pred_check
      _
    $region19: #{tpu_custom_call.1} parent=1 // pred_check_branch
      %51 = sbr.rel (0) target = $region21
    $region20: #{tpu_custom_call.1} parent=1 // pred_region
      %52 = dma.done [#allocation3], 1024
    $region21: #{tpu_custom_call.1} parent=1 // pred_fallthru
      _
    // Predicated region
    $region22: #{tpu_custom_call.1} parent=1 // pred_check
      _
    $region23: #{tpu_custom_call.1} parent=1 // pred_check_branch
      %54 = sbr.rel (0) target = $region25
    $region24: #{tpu_custom_call.1} parent=1 // pred_region
      %55 = dma.done [#allocation6], 1024
    $region25: #{tpu_custom_call.1} parent=1 // pred_fallthru
      _
    // Predicated region
    $region26: #{tpu_custom_call.1} parent=1 // pred_check
      _
    $region27: #{tpu_custom_call.1} parent=1 // pred_check_branch
      %57 = sbr.rel (0) target = $region29
    $region28: #{tpu_custom_call.1} parent=1 // pred_region
      %58 = dma.done [#allocation6], 1024
    $region29: #{tpu_custom_call.1} parent=1 // pred_fallthru
      _
    %v60 = vld [vmem:[%s3] sm:$0x1]
    %v61 = vld [vmem:[%s3 + $0x1] sm:$0x1]
    %v62 = vld [vmem:[%s3 + $0x2] sm:$0x1]
    %v63 = vld [vmem:[%s3 + $0x3] sm:$0x1]
    %v64 = vld [vmem:[#allocation2] sm:$0xf]
    %v65 = vld [vmem:[#allocation2 + $0x4] sm:$0xf]
    %v66 = vld [vmem:[#allocation2 + $0x8] sm:$0xf]
    %v67 = vld [vmem:[#allocation2 + $0xc] sm:$0xf]
    %v68 = vld [vmem:[#allocation2 + $0x10] sm:$0xf]
    %v69 = vld [vmem:[#allocation2 + $0x14] sm:$0xf]
    %v70 = vld [vmem:[#allocation2 + $0x18] sm:$0xf]
    %v71 = vld [vmem:[#allocation2 + $0x1c] sm:$0xf]
    %v72 = vld [vmem:[#allocation2 + $0x20] sm:$0xf]
    %v73 = vld [vmem:[#allocation2 + $0x24] sm:$0xf]
    %v74 = vld [vmem:[#allocation2 + $0x28] sm:$0xf]
    %v75 = vld [vmem:[#allocation2 + $0x2c] sm:$0xf]
    %v76 = vld [vmem:[#allocation2 + $0x30] sm:$0xf]
    %v77 = vld [vmem:[#allocation2 + $0x34] sm:$0xf]
    %v78 = vld [vmem:[#allocation2 + $0x38] sm:$0xf]
    %v79 = vld [vmem:[#allocation2 + $0x3c] sm:$0xf]
    %v80 = vld [vmem:[#allocation5] sm:$0xf]
    %v81 = vld [vmem:[#allocation5 + $0x4] sm:$0xf]
    %v82 = vld [vmem:[#allocation5 + $0x8] sm:$0xf]
    %v83 = vld [vmem:[#allocation5 + $0xc] sm:$0xf]
    %v84 = vld [vmem:[#allocation5 + $0x10] sm:$0xf]
    %v85 = vld [vmem:[#allocation5 + $0x14] sm:$0xf]
    %v86 = vld [vmem:[#allocation5 + $0x18] sm:$0xf]
    %v87 = vld [vmem:[#allocation5 + $0x1c] sm:$0xf]
    %v88 = vld [vmem:[#allocation5 + $0x20] sm:$0xf]
    %v89 = vld [vmem:[#allocation5 + $0x24] sm:$0xf]
    %v90 = vld [vmem:[#allocation5 + $0x28] sm:$0xf]
    %v91 = vld [vmem:[#allocation5 + $0x2c] sm:$0xf]
    %v92 = vld [vmem:[#allocation5 + $0x30] sm:$0xf]
    %v93 = vld [vmem:[#allocation5 + $0x34] sm:$0xf]
    %v94 = vld [vmem:[#allocation5 + $0x38] sm:$0xf]
    %v95 = vld [vmem:[#allocation5 + $0x3c] sm:$0xf]
    %v96 = vlaneseq
    %v97 = vshrl.u32 %v96, 7
    %v98 = vsub.s32 0, %v97
    %v99 = vrot.slane %v60, %v98
    %v116 = vunpack.c.l.b16 %v64
    %v117 = vunpack.c.l.b16 %v65
    %v118 = vunpack.c.l.b16 %v66
    %v119 = vunpack.c.l.b16 %v67
    %v120 = vunpack.c.l.b16 %v68
    %v121 = vunpack.c.l.b16 %v69
    %v122 = vunpack.c.l.b16 %v70
    %v123 = vunpack.c.l.b16 %v71
    %v124 = vunpack.c.l.b16 %v72
    %v125 = vunpack.c.l.b16 %v73
    %v126 = vunpack.c.l.b16 %v74
    %v127 = vunpack.c.l.b16 %v75
    %v128 = vunpack.c.l.b16 %v76
    %v129 = vunpack.c.l.b16 %v77
    %v130 = vunpack.c.l.b16 %v78
    %v131 = vunpack.c.l.b16 %v79
    %v132 = vpack.c.b16 %v117, %v116
    %v133 = vpack.c.b16 %v119, %v118
    %v134 = vpack.c.b16 %v121, %v120
    %v135 = vpack.c.b16 %v123, %v122
    %v136 = vpack.c.b16 %v125, %v124
    %v137 = vpack.c.b16 %v127, %v126
    %v138 = vpack.c.b16 %v129, %v128
    %v139 = vpack.c.b16 %v131, %v130
    %v164 = vunpack.c.l.b16 %v80
    %v165 = vunpack.c.l.b16 %v81
    %v166 = vunpack.c.l.b16 %v82
    %v167 = vunpack.c.l.b16 %v83
    %v168 = vunpack.c.l.b16 %v84
    %v169 = vunpack.c.l.b16 %v85
    %v170 = vunpack.c.l.b16 %v86
    %v171 = vunpack.c.l.b16 %v87
    %v172 = vunpack.c.l.b16 %v88
    %v173 = vunpack.c.l.b16 %v89
    %v174 = vunpack.c.l.b16 %v90
    %v175 = vunpack.c.l.b16 %v91
    %v176 = vunpack.c.l.b16 %v92
    %v177 = vunpack.c.l.b16 %v93
    %v178 = vunpack.c.l.b16 %v94
    %v179 = vunpack.c.l.b16 %v95
    %v180 = vpack.c.b16 %v165, %v164
    %v181 = vpack.c.b16 %v167, %v166
    %v182 = vpack.c.b16 %v169, %v168
    %v183 = vpack.c.b16 %v171, %v170
    %v184 = vpack.c.b16 %v173, %v172
    %v185 = vpack.c.b16 %v175, %v174
    %v186 = vpack.c.b16 %v177, %v176
    %v187 = vpack.c.b16 %v179, %v178
    %196 = vmatprep.subr.bf16.mxu0 0
    %197 = vmatpush1.bf16.msra.mxu0 %v187
    %198 = vmatprep.subr.bf16.mxu0 0
    %199 = vmatpush1.bf16.msra.mxu0 %v186
    %200 = vmatprep.subr.bf16.mxu0 0
    %201 = vmatpush1.bf16.msra.mxu0 %v185
    %202 = vmatprep.subr.bf16.mxu0 0
    %203 = vmatpush1.bf16.msra.mxu0 %v184
    %204 = vmatprep.subr.bf16.mxu0 0
    %205 = vmatpush1.bf16.msra.mxu0 %v183
    %206 = vmatprep.subr.bf16.mxu0 0
    %207 = vmatpush1.bf16.msra.mxu0 %v182
    %208 = vmatprep.subr.bf16.mxu0 0
    %209 = vmatpush1.bf16.msra.mxu0 %v181
    %210 = vmatprep.subr.bf16.mxu0 0
    %211 = vmatpush1.bf16.msra.mxu0 %v180
    %212 = vmatprep.subr.bf16.mxu0 0
    %213 = vmatpush2.bf16.msra.mxu0 0
    %214 = vmatprep.subr.bf16.mxu0 0
    %215 = vmatpush2.bf16.msra.mxu0 0
    %216 = vmatprep.subr.bf16.mxu0 0
    %217 = vmatpush2.bf16.msra.mxu0 0
    %218 = vmatprep.subr.bf16.mxu0 0
    %219 = vmatpush2.bf16.msra.mxu0 0
    %220 = vmatprep.subr.bf16.mxu0 0
    %221 = vmatpush2.bf16.msra.mxu0 0
    %222 = vmatprep.subr.bf16.mxu0 0
    %223 = vmatpush2.bf16.msra.mxu0 0
    %224 = vmatprep.subr.bf16.mxu0 0
    %225 = vmatpush2.bf16.msra.mxu0 0
    %226 = vmatprep.subr.bf16.mxu0 0
    %227 = vmatpush2.bf16.msra.mxu0 0
    %228 = vmatprep.mubr.bf16.mxu0 0
    %229 = vmatmul.mubr.bf16.gmra.mxu0 %v132
    %v230 = vpop.f32.mrf.mxu0
    %v231 = vadd.f32 %v99, %v230
    %v232 = vpop.f32.mrf.mxu0
    %v233 = vpop.f32.mrf.mxu0
    %v234 = vadd.f32 %v99, %v233
    %v235 = vpop.f32.mrf.mxu0
    %236 = vmatprep.mubr.bf16.mxu0 0
    %237 = vmatmul.mubr.bf16.gmra.mxu0 %v133
    %v238 = vpop.f32.mrf.mxu0
    %v239 = vadd.f32 %v99, %v238
    %v240 = vpop.f32.mrf.mxu0
    %v241 = vpop.f32.mrf.mxu0
    %v242 = vadd.f32 %v99, %v241
    %v243 = vpop.f32.mrf.mxu0
    %244 = vmatprep.mubr.bf16.mxu0 0
    %245 = vmatmul.mubr.bf16.gmra.mxu0 %v134
    %v246 = vpop.f32.mrf.mxu0
    %v247 = vadd.f32 %v99, %v246
    %v248 = vpop.f32.mrf.mxu0
    %v249 = vpop.f32.mrf.mxu0
    %v250 = vadd.f32 %v99, %v249
    %v251 = vpop.f32.mrf.mxu0
    %252 = vmatprep.mubr.bf16.mxu0 0
    %253 = vmatmul.mubr.bf16.gmra.mxu0 %v135
    %v254 = vpop.f32.mrf.mxu0
    %v255 = vadd.f32 %v99, %v254
    %v256 = vpop.f32.mrf.mxu0
    %v257 = vpop.f32.mrf.mxu0
    %v258 = vadd.f32 %v99, %v257
    %v259 = vpop.f32.mrf.mxu0
    %260 = vmatprep.mubr.bf16.mxu0 0
    %261 = vmatmul.mubr.bf16.gmra.mxu0 %v136
    %v262 = vpop.f32.mrf.mxu0
    %v263 = vadd.f32 %v99, %v262
    %v264 = vpop.f32.mrf.mxu0
    %v265 = vpop.f32.mrf.mxu0
    %v266 = vadd.f32 %v99, %v265
    %v267 = vpop.f32.mrf.mxu0
    %268 = vmatprep.mubr.bf16.mxu0 0
    %269 = vmatmul.mubr.bf16.gmra.mxu0 %v137
    %v270 = vpop.f32.mrf.mxu0
    %v271 = vadd.f32 %v99, %v270
    %v272 = vpop.f32.mrf.mxu0
    %v273 = vpop.f32.mrf.mxu0
    %v274 = vadd.f32 %v99, %v273
    %v275 = vpop.f32.mrf.mxu0
    %276 = vmatprep.mubr.bf16.mxu0 0
    %277 = vmatmul.mubr.bf16.gmra.mxu0 %v138
    %v278 = vpop.f32.mrf.mxu0
    %v279 = vadd.f32 %v99, %v278
    %v280 = vpop.f32.mrf.mxu0
    %v281 = vpop.f32.mrf.mxu0
    %v282 = vadd.f32 %v99, %v281
    %v283 = vpop.f32.mrf.mxu0
    %284 = vmatprep.mubr.bf16.mxu0 0
    %285 = vmatmul.mubr.bf16.gmra.mxu0 %v139
    %v286 = vpop.f32.mrf.mxu0
    %v287 = vadd.f32 %v99, %v286
    %v288 = vpop.f32.mrf.mxu0
    %v289 = vpop.f32.mrf.mxu0
    %v290 = vadd.f32 %v99, %v289
    %v291 = vpop.f32.mrf.mxu0
    %292 = vdwg.mxu0
    %v293 = vmul.f32 %v231, 0.5
    %v294 = vmul.f32 %v234, 0.5
    %v295 = vmul.f32 %v239, 0.5
    %v296 = vmul.f32 %v242, 0.5
    %v297 = vmul.f32 %v247, 0.5
    %v298 = vmul.f32 %v250, 0.5
    %v299 = vmul.f32 %v255, 0.5
    %v300 = vmul.f32 %v258, 0.5
    %v301 = vmul.f32 %v263, 0.5
    %v302 = vmul.f32 %v266, 0.5
    %v303 = vmul.f32 %v271, 0.5
    %v304 = vmul.f32 %v274, 0.5
    %v305 = vmul.f32 %v279, 0.5
    %v306 = vmul.f32 %v282, 0.5
    %v307 = vmul.f32 %v287, 0.5
    %v308 = vmul.f32 %v290, 0.5
    %v309 = vmul.f32 %v231, 0.70710677
    %v310 = vmul.f32 %v234, 0.70710677
    %v311 = vmul.f32 %v239, 0.70710677
    %v312 = vmul.f32 %v242, 0.70710677
    %v313 = vmul.f32 %v247, 0.70710677
    %v314 = vmul.f32 %v250, 0.70710677
    %v315 = vmul.f32 %v255, 0.70710677
    %v316 = vmul.f32 %v258, 0.70710677
    %v317 = vmul.f32 %v263, 0.70710677
    %v318 = vmul.f32 %v266, 0.70710677
    %v319 = vmul.f32 %v271, 0.70710677
    %v320 = vmul.f32 %v274, 0.70710677
    %v321 = vmul.f32 %v279, 0.70710677
    %v322 = vmul.f32 %v282, 0.70710677
    %v323 = vmul.f32 %v287, 0.70710677
    %v324 = vmul.f32 %v290, 0.70710677
    %v325 = verf.f32.pop %v309
    %v326 = verf.f32.pop %v310
    %v327 = verf.f32.pop %v311
    %v328 = verf.f32.pop %v312
    %v329 = verf.f32.pop %v313
    %v330 = verf.f32.pop %v314
    %v331 = verf.f32.pop %v315
    %v332 = verf.f32.pop %v316
    %v333 = verf.f32.pop %v317
    %v334 = verf.f32.pop %v318
    %v335 = verf.f32.pop %v319
    %v336 = verf.f32.pop %v320
    %v337 = verf.f32.pop %v321
    %v338 = verf.f32.pop %v322
    %v339 = verf.f32.pop %v323
    %v340 = verf.f32.pop %v324
    %v341 = vadd.f32 %v325, 1.0
    %v342 = vadd.f32 %v326, 1.0
    %v343 = vadd.f32 %v327, 1.0
    %v344 = vadd.f32 %v328, 1.0
    %v345 = vadd.f32 %v329, 1.0
    %v346 = vadd.f32 %v330, 1.0
    %v347 = vadd.f32 %v331, 1.0
    %v348 = vadd.f32 %v332, 1.0
    %v349 = vadd.f32 %v333, 1.0
    %v350 = vadd.f32 %v334, 1.0
    %v351 = vadd.f32 %v335, 1.0
    %v352 = vadd.f32 %v336, 1.0
    %v353 = vadd.f32 %v337, 1.0
    %v354 = vadd.f32 %v338, 1.0
    %v355 = vadd.f32 %v339, 1.0
    %v356 = vadd.f32 %v340, 1.0
    %v357 = vmul.f32 %v293, %v341
    %v358 = vmul.f32 %v294, %v342
    %v359 = vmul.f32 %v295, %v343
    %v360 = vmul.f32 %v296, %v344
    %v361 = vmul.f32 %v297, %v345
    %v362 = vmul.f32 %v298, %v346
    %v363 = vmul.f32 %v299, %v347
    %v364 = vmul.f32 %v300, %v348
    %v365 = vmul.f32 %v301, %v349
    %v366 = vmul.f32 %v302, %v350
    %v367 = vmul.f32 %v303, %v351
    %v368 = vmul.f32 %v304, %v352
    %v369 = vmul.f32 %v305, %v353
    %v370 = vmul.f32 %v306, %v354
    %v371 = vmul.f32 %v307, %v355
    %v372 = vmul.f32 %v308, %v356
    %v373 = vpack.c.bf16 %v358, %v357
    %v374 = vpack.c.bf16 %v360, %v359
    %v375 = vpack.c.bf16 %v362, %v361
    %v376 = vpack.c.bf16 %v364, %v363
    %v377 = vpack.c.bf16 %v366, %v365
    %v378 = vpack.c.bf16 %v368, %v367
    %v379 = vpack.c.bf16 %v370, %v369
    %v380 = vpack.c.bf16 %v372, %v371
    %v381 = vld [vmem:[#allocation7] sm:$0xf]
    %v382 = vld [vmem:[#allocation7 + $0x4] sm:$0xf]
    %v383 = vld [vmem:[#allocation7 + $0x8] sm:$0xf]
    %v384 = vld [vmem:[#allocation7 + $0xc] sm:$0xf]
    %v385 = vld [vmem:[#allocation7 + $0x10] sm:$0xf]
    %v386 = vld [vmem:[#allocation7 + $0x14] sm:$0xf]
    %v387 = vld [vmem:[#allocation7 + $0x18] sm:$0xf]
    %v388 = vld [vmem:[#allocation7 + $0x1c] sm:$0xf]
    %v389 = vld [vmem:[#allocation7 + $0x20] sm:$0xf]
    %v390 = vld [vmem:[#allocation7 + $0x24] sm:$0xf]
    %v391 = vld [vmem:[#allocation7 + $0x28] sm:$0xf]
    %v392 = vld [vmem:[#allocation7 + $0x2c] sm:$0xf]
    %v393 = vld [vmem:[#allocation7 + $0x30] sm:$0xf]
    %v394 = vld [vmem:[#allocation7 + $0x34] sm:$0xf]
    %v395 = vld [vmem:[#allocation7 + $0x38] sm:$0xf]
    %v396 = vld [vmem:[#allocation7 + $0x3c] sm:$0xf]
    %v397 = vlaneseq
    %v398 = vshrl.u32 %v397, 7
    %v399 = vsub.s32 0, %v398
    %v400 = vrot.slane %v61, %v399
    %v417 = vunpack.c.l.b16 %v381
    %v418 = vunpack.c.l.b16 %v382
    %v419 = vunpack.c.l.b16 %v383
    %v420 = vunpack.c.l.b16 %v384
    %v421 = vunpack.c.l.b16 %v385
    %v422 = vunpack.c.l.b16 %v386
    %v423 = vunpack.c.l.b16 %v387
    %v424 = vunpack.c.l.b16 %v388
    %v425 = vunpack.c.l.b16 %v389
    %v426 = vunpack.c.l.b16 %v390
    %v427 = vunpack.c.l.b16 %v391
    %v428 = vunpack.c.l.b16 %v392
    %v429 = vunpack.c.l.b16 %v393
    %v430 = vunpack.c.l.b16 %v394
    %v431 = vunpack.c.l.b16 %v395
    %v432 = vunpack.c.l.b16 %v396
    %v433 = vpack.c.b16 %v418, %v417
    %v434 = vpack.c.b16 %v420, %v419
    %v435 = vpack.c.b16 %v422, %v421
    %v436 = vpack.c.b16 %v424, %v423
    %v437 = vpack.c.b16 %v426, %v425
    %v438 = vpack.c.b16 %v428, %v427
    %v439 = vpack.c.b16 %v430, %v429
    %v440 = vpack.c.b16 %v432, %v431
    %449 = vmatprep.subr.bf16.mxu0 0
    %450 = vmatpush1.bf16.msra.mxu0 %v440
    %451 = vmatprep.subr.bf16.mxu0 0
    %452 = vmatpush1.bf16.msra.mxu0 %v439
    %453 = vmatprep.subr.bf16.mxu0 0
    %454 = vmatpush1.bf16.msra.mxu0 %v438
    %455 = vmatprep.subr.bf16.mxu0 0
    %456 = vmatpush1.bf16.msra.mxu0 %v437
    %457 = vmatprep.subr.bf16.mxu0 0
    %458 = vmatpush1.bf16.msra.mxu0 %v436
    %459 = vmatprep.subr.bf16.mxu0 0
    %460 = vmatpush1.bf16.msra.mxu0 %v435
    %461 = vmatprep.subr.bf16.mxu0 0
    %462 = vmatpush1.bf16.msra.mxu0 %v434
    %463 = vmatprep.subr.bf16.mxu0 0
    %464 = vmatpush1.bf16.msra.mxu0 %v433
    %465 = vmatprep.subr.bf16.mxu0 0
    %466 = vmatpush2.bf16.msra.mxu0 0
    %467 = vmatprep.subr.bf16.mxu0 0
    %468 = vmatpush2.bf16.msra.mxu0 0
    %469 = vmatprep.subr.bf16.mxu0 0
    %470 = vmatpush2.bf16.msra.mxu0 0
    %471 = vmatprep.subr.bf16.mxu0 0
    %472 = vmatpush2.bf16.msra.mxu0 0
    %473 = vmatprep.subr.bf16.mxu0 0
    %474 = vmatpush2.bf16.msra.mxu0 0
    %475 = vmatprep.subr.bf16.mxu0 0
    %476 = vmatpush2.bf16.msra.mxu0 0
    %477 = vmatprep.subr.bf16.mxu0 0
    %478 = vmatpush2.bf16.msra.mxu0 0
    %479 = vmatprep.subr.bf16.mxu0 0
    %480 = vmatpush2.bf16.msra.mxu0 0
    %481 = vmatprep.mubr.bf16.mxu0 0
    %482 = vmatmul.mubr.bf16.gmra.mxu0 %v373
    %v483 = vpop.f32.mrf.mxu0
    %v484 = vadd.f32 %v400, %v483
    %v485 = vpop.f32.mrf.mxu0
    %v486 = vpop.f32.mrf.mxu0
    %v487 = vadd.f32 %v400, %v486
    %v488 = vpop.f32.mrf.mxu0
    %489 = vmatprep.mubr.bf16.mxu0 0
    %490 = vmatmul.mubr.bf16.gmra.mxu0 %v374
    %v491 = vpop.f32.mrf.mxu0
    %v492 = vadd.f32 %v400, %v491
    %v493 = vpop.f32.mrf.mxu0
    %v494 = vpop.f32.mrf.mxu0
    %v495 = vadd.f32 %v400, %v494
    %v496 = vpop.f32.mrf.mxu0
    %497 = vmatprep.mubr.bf16.mxu0 0
    %498 = vmatmul.mubr.bf16.gmra.mxu0 %v375
    %v499 = vpop.f32.mrf.mxu0
    %v500 = vadd.f32 %v400, %v499
    %v501 = vpop.f32.mrf.mxu0
    %v502 = vpop.f32.mrf.mxu0
    %v503 = vadd.f32 %v400, %v502
    %v504 = vpop.f32.mrf.mxu0
    %505 = vmatprep.mubr.bf16.mxu0 0
    %506 = vmatmul.mubr.bf16.gmra.mxu0 %v376
    %v507 = vpop.f32.mrf.mxu0
    %v508 = vadd.f32 %v400, %v507
    %v509 = vpop.f32.mrf.mxu0
    %v510 = vpop.f32.mrf.mxu0
    %v511 = vadd.f32 %v400, %v510
    %v512 = vpop.f32.mrf.mxu0
    %513 = vmatprep.mubr.bf16.mxu0 0
    %514 = vmatmul.mubr.bf16.gmra.mxu0 %v377
    %v515 = vpop.f32.mrf.mxu0
    %v516 = vadd.f32 %v400, %v515
    %v517 = vpop.f32.mrf.mxu0
    %v518 = vpop.f32.mrf.mxu0
    %v519 = vadd.f32 %v400, %v518
    %v520 = vpop.f32.mrf.mxu0
    %521 = vmatprep.mubr.bf16.mxu0 0
    %522 = vmatmul.mubr.bf16.gmra.mxu0 %v378
    %v523 = vpop.f32.mrf.mxu0
    %v524 = vadd.f32 %v400, %v523
    %v525 = vpop.f32.mrf.mxu0
    %v526 = vpop.f32.mrf.mxu0
    %v527 = vadd.f32 %v400, %v526
    %v528 = vpop.f32.mrf.mxu0
    %529 = vmatprep.mubr.bf16.mxu0 0
    %530 = vmatmul.mubr.bf16.gmra.mxu0 %v379
    %v531 = vpop.f32.mrf.mxu0
    %v532 = vadd.f32 %v400, %v531
    %v533 = vpop.f32.mrf.mxu0
    %v534 = vpop.f32.mrf.mxu0
    %v535 = vadd.f32 %v400, %v534
    %v536 = vpop.f32.mrf.mxu0
    %537 = vmatprep.mubr.bf16.mxu0 0
    %538 = vmatmul.mubr.bf16.gmra.mxu0 %v380
    %v539 = vpop.f32.mrf.mxu0
    %v540 = vadd.f32 %v400, %v539
    %v541 = vpop.f32.mrf.mxu0
    %v542 = vpop.f32.mrf.mxu0
    %v543 = vadd.f32 %v400, %v542
    %v544 = vpop.f32.mrf.mxu0
    %545 = vdwg.mxu0
    %v546 = vadd.f32 %v484, %v231
    %v547 = vadd.f32 %v487, %v234
    %v548 = vadd.f32 %v492, %v239
    %v549 = vadd.f32 %v495, %v242
    %v550 = vadd.f32 %v500, %v247
    %v551 = vadd.f32 %v503, %v250
    %v552 = vadd.f32 %v508, %v255
    %v553 = vadd.f32 %v511, %v258
    %v554 = vadd.f32 %v516, %v263
    %v555 = vadd.f32 %v519, %v266
    %v556 = vadd.f32 %v524, %v271
    %v557 = vadd.f32 %v527, %v274
    %v558 = vadd.f32 %v532, %v279
    %v559 = vadd.f32 %v535, %v282
    %v560 = vadd.f32 %v540, %v287
    %v561 = vadd.f32 %v543, %v290
    %562 = vadd.xlane.f32.xlu0 %v546
    %v563 = vpop.xlane.xlu0 %562
    %564 = vadd.xlane.f32.xlu0 %v547
    %v565 = vpop.xlane.xlu0 %564
    %566 = vadd.xlane.f32.xlu0 %v548
    %v567 = vpop.xlane.xlu0 %566
    %568 = vadd.xlane.f32.xlu0 %v549
    %v569 = vpop.xlane.xlu0 %568
    %570 = vadd.xlane.f32.xlu0 %v550
    %v571 = vpop.xlane.xlu0 %570
    %572 = vadd.xlane.f32.xlu0 %v551
    %v573 = vpop.xlane.xlu0 %572
    %574 = vadd.xlane.f32.xlu0 %v552
    %v575 = vpop.xlane.xlu0 %574
    %576 = vadd.xlane.f32.xlu0 %v553
    %v577 = vpop.xlane.xlu0 %576
    %578 = vadd.xlane.f32.xlu0 %v554
    %v579 = vpop.xlane.xlu0 %578
    %580 = vadd.xlane.f32.xlu0 %v555
    %v581 = vpop.xlane.xlu0 %580
    %582 = vadd.xlane.f32.xlu0 %v556
    %v583 = vpop.xlane.xlu0 %582
    %584 = vadd.xlane.f32.xlu0 %v557
    %v585 = vpop.xlane.xlu0 %584
    %586 = vadd.xlane.f32.xlu0 %v558
    %v587 = vpop.xlane.xlu0 %586
    %588 = vadd.xlane.f32.xlu0 %v559
    %v589 = vpop.xlane.xlu0 %588
    %590 = vadd.xlane.f32.xlu0 %v560
    %v591 = vpop.xlane.xlu0 %590
    %592 = vadd.xlane.f32.xlu0 %v561
    %v593 = vpop.xlane.xlu0 %592
    %v594 = vmul.f32 %v563, 0.0078125
    %v595 = vmul.f32 %v565, 0.0078125
    %v596 = vmul.f32 %v567, 0.0078125
    %v597 = vmul.f32 %v569, 0.0078125
    %v598 = vmul.f32 %v571, 0.0078125
    %v599 = vmul.f32 %v573, 0.0078125
    %v600 = vmul.f32 %v575, 0.0078125
    %v601 = vmul.f32 %v577, 0.0078125
    %v602 = vmul.f32 %v579, 0.0078125
    %v603 = vmul.f32 %v581, 0.0078125
    %v604 = vmul.f32 %v583, 0.0078125
    %v605 = vmul.f32 %v585, 0.0078125
    %v606 = vmul.f32 %v587, 0.0078125
    %v607 = vmul.f32 %v589, 0.0078125
    %v608 = vmul.f32 %v591, 0.0078125
    %v609 = vmul.f32 %v593, 0.0078125
    %v610 = vsub.f32 %v546, %v594
    %v611 = vsub.f32 %v547, %v595
    %v612 = vsub.f32 %v548, %v596
    %v613 = vsub.f32 %v549, %v597
    %v614 = vsub.f32 %v550, %v598
    %v615 = vsub.f32 %v551, %v599
    %v616 = vsub.f32 %v552, %v600
    %v617 = vsub.f32 %v553, %v601
    %v618 = vsub.f32 %v554, %v602
    %v619 = vsub.f32 %v555, %v603
    %v620 = vsub.f32 %v556, %v604
    %v621 = vsub.f32 %v557, %v605
    %v622 = vsub.f32 %v558, %v606
    %v623 = vsub.f32 %v559, %v607
    %v624 = vsub.f32 %v560, %v608
    %v625 = vsub.f32 %v561, %v609
    %v626 = vmul.f32 %v610, %v610
    %v627 = vmul.f32 %v611, %v611
    %v628 = vmul.f32 %v612, %v612
    %v629 = vmul.f32 %v613, %v613
    %v630 = vmul.f32 %v614, %v614
    %v631 = vmul.f32 %v615, %v615
    %v632 = vmul.f32 %v616, %v616
    %v633 = vmul.f32 %v617, %v617
    %v634 = vmul.f32 %v618, %v618
    %v635 = vmul.f32 %v619, %v619
    %v636 = vmul.f32 %v620, %v620
    %v637 = vmul.f32 %v621, %v621
    %v638 = vmul.f32 %v622, %v622
    %v639 = vmul.f32 %v623, %v623
    %v640 = vmul.f32 %v624, %v624
    %v641 = vmul.f32 %v625, %v625
    %642 = vadd.xlane.f32.xlu0 %v626
    %v643 = vpop.xlane.xlu0 %642
    %644 = vadd.xlane.f32.xlu0 %v627
    %v645 = vpop.xlane.xlu0 %644
    %646 = vadd.xlane.f32.xlu0 %v628
    %v647 = vpop.xlane.xlu0 %646
    %648 = vadd.xlane.f32.xlu0 %v629
    %v649 = vpop.xlane.xlu0 %648
    %650 = vadd.xlane.f32.xlu0 %v630
    %v651 = vpop.xlane.xlu0 %650
    %652 = vadd.xlane.f32.xlu0 %v631
    %v653 = vpop.xlane.xlu0 %652
    %654 = vadd.xlane.f32.xlu0 %v632
    %v655 = vpop.xlane.xlu0 %654
    %656 = vadd.xlane.f32.xlu0 %v633
    %v657 = vpop.xlane.xlu0 %656
    %658 = vadd.xlane.f32.xlu0 %v634
    %v659 = vpop.xlane.xlu0 %658
    %660 = vadd.xlane.f32.xlu0 %v635
    %v661 = vpop.xlane.xlu0 %660
    %662 = vadd.xlane.f32.xlu0 %v636
    %v663 = vpop.xlane.xlu0 %662
    %664 = vadd.xlane.f32.xlu0 %v637
    %v665 = vpop.xlane.xlu0 %664
    %666 = vadd.xlane.f32.xlu0 %v638
    %v667 = vpop.xlane.xlu0 %666
    %668 = vadd.xlane.f32.xlu0 %v639
    %v669 = vpop.xlane.xlu0 %668
    %670 = vadd.xlane.f32.xlu0 %v640
    %v671 = vpop.xlane.xlu0 %670
    %672 = vadd.xlane.f32.xlu0 %v641
    %v673 = vpop.xlane.xlu0 %672
    %v674 = vmul.f32 %v643, 0.0078125
    %v675 = vmul.f32 %v645, 0.0078125
    %v676 = vmul.f32 %v647, 0.0078125
    %v677 = vmul.f32 %v649, 0.0078125
    %v678 = vmul.f32 %v651, 0.0078125
    %v679 = vmul.f32 %v653, 0.0078125
    %v680 = vmul.f32 %v655, 0.0078125
    %v681 = vmul.f32 %v657, 0.0078125
    %v682 = vmul.f32 %v659, 0.0078125
    %v683 = vmul.f32 %v661, 0.0078125
    %v684 = vmul.f32 %v663, 0.0078125
    %v685 = vmul.f32 %v665, 0.0078125
    %v686 = vmul.f32 %v667, 0.0078125
    %v687 = vmul.f32 %v669, 0.0078125
    %v688 = vmul.f32 %v671, 0.0078125
    %v689 = vmul.f32 %v673, 0.0078125
    %v690 = vadd.f32 %v674, 1e-05
    %v691 = vadd.f32 %v675, 1e-05
    %v692 = vadd.f32 %v676, 1e-05
    %v693 = vadd.f32 %v677, 1e-05
    %v694 = vadd.f32 %v678, 1e-05
    %v695 = vadd.f32 %v679, 1e-05
    %v696 = vadd.f32 %v680, 1e-05
    %v697 = vadd.f32 %v681, 1e-05
    %v698 = vadd.f32 %v682, 1e-05
    %v699 = vadd.f32 %v683, 1e-05
    %v700 = vadd.f32 %v684, 1e-05
    %v701 = vadd.f32 %v685, 1e-05
    %v702 = vadd.f32 %v686, 1e-05
    %v703 = vadd.f32 %v687, 1e-05
    %v704 = vadd.f32 %v688, 1e-05
    %v705 = vadd.f32 %v689, 1e-05
    %v706 = vrsqrt.pop %v690
    %v707 = vrsqrt.pop %v691
    %v708 = vrsqrt.pop %v692
    %v709 = vrsqrt.pop %v693
    %v710 = vrsqrt.pop %v694
    %v711 = vrsqrt.pop %v695
    %v712 = vrsqrt.pop %v696
    %v713 = vrsqrt.pop %v697
    %v714 = vrsqrt.pop %v698
    %v715 = vrsqrt.pop %v699
    %v716 = vrsqrt.pop %v700
    %v717 = vrsqrt.pop %v701
    %v718 = vrsqrt.pop %v702
    %v719 = vrsqrt.pop %v703
    %v720 = vrsqrt.pop %v704
    %v721 = vrsqrt.pop %v705
    %v722 = vlaneseq
    %v723 = vshrl.u32 %v722, 7
    %v724 = vsub.s32 0, %v723
    %v725 = vrot.slane %v62, %v724
    %v726 = vmul.f32 %v725, %v706
    %v727 = vmul.f32 %v725, %v707
    %v728 = vmul.f32 %v725, %v708
    %v729 = vmul.f32 %v725, %v709
    %v730 = vmul.f32 %v725, %v710
    %v731 = vmul.f32 %v725, %v711
    %v732 = vmul.f32 %v725, %v712
    %v733 = vmul.f32 %v725, %v713
    %v734 = vmul.f32 %v725, %v714
    %v735 = vmul.f32 %v725, %v715
    %v736 = vmul.f32 %v725, %v716
    %v737 = vmul.f32 %v725, %v717
    %v738 = vmul.f32 %v725, %v718
    %v739 = vmul.f32 %v725, %v719
    %v740 = vmul.f32 %v725, %v720
    %v741 = vmul.f32 %v725, %v721
    %v742 = vmul.f32 %v610, %v726
    %v743 = vmul.f32 %v611, %v727
    %v744 = vmul.f32 %v612, %v728
    %v745 = vmul.f32 %v613, %v729
    %v746 = vmul.f32 %v614, %v730
    %v747 = vmul.f32 %v615, %v731
    %v748 = vmul.f32 %v616, %v732
    %v749 = vmul.f32 %v617, %v733
    %v750 = vmul.f32 %v618, %v734
    %v751 = vmul.f32 %v619, %v735
    %v752 = vmul.f32 %v620, %v736
    %v753 = vmul.f32 %v621, %v737
    %v754 = vmul.f32 %v622, %v738
    %v755 = vmul.f32 %v623, %v739
    %v756 = vmul.f32 %v624, %v740
    %v757 = vmul.f32 %v625, %v741
    %v758 = vlaneseq
    %v759 = vshrl.u32 %v758, 7
    %v760 = vsub.s32 0, %v759
    %v761 = vrot.slane %v63, %v760
    %v762 = vadd.f32 %v742, %v761
    %v763 = vadd.f32 %v743, %v761
    %v764 = vadd.f32 %v744, %v761
    %v765 = vadd.f32 %v745, %v761
    %v766 = vadd.f32 %v746, %v761
    %v767 = vadd.f32 %v747, %v761
    %v768 = vadd.f32 %v748, %v761
    %v769 = vadd.f32 %v749, %v761
    %v770 = vadd.f32 %v750, %v761
    %v771 = vadd.f32 %v751, %v761
    %v772 = vadd.f32 %v752, %v761
    %v773 = vadd.f32 %v753, %v761
    %v774 = vadd.f32 %v754, %v761
    %v775 = vadd.f32 %v755, %v761
    %v776 = vadd.f32 %v756, %v761
    %v777 = vadd.f32 %v757, %v761
    %778 = vst [vmem:[#allocation8] sm:$0xff] %v762
    %779 = vst [vmem:[#allocation8 + $0x8] sm:$0xff] %v763
    %780 = vst [vmem:[#allocation8 + $0x10] sm:$0xff] %v764
    %781 = vst [vmem:[#allocation8 + $0x18] sm:$0xff] %v765
    %782 = vst [vmem:[#allocation8 + $0x20] sm:$0xff] %v766
    %783 = vst [vmem:[#allocation8 + $0x28] sm:$0xff] %v767
    %784 = vst [vmem:[#allocation8 + $0x30] sm:$0xff] %v768
    %785 = vst [vmem:[#allocation8 + $0x38] sm:$0xff] %v769
    %786 = vst [vmem:[#allocation8 + $0x40] sm:$0xff] %v770
    %787 = vst [vmem:[#allocation8 + $0x48] sm:$0xff] %v771
    %788 = vst [vmem:[#allocation8 + $0x50] sm:$0xff] %v772
    %789 = vst [vmem:[#allocation8 + $0x58] sm:$0xff] %v773
    %790 = vst [vmem:[#allocation8 + $0x60] sm:$0xff] %v774
    %791 = vst [vmem:[#allocation8 + $0x68] sm:$0xff] %v775
    %792 = vst [vmem:[#allocation8 + $0x70] sm:$0xff] %v776
    %793 = vst [vmem:[#allocation8 + $0x78] sm:$0xff] %v777
    // Predicated region
    $region30: #{tpu_custom_call.1} parent=1 // pred_check
      _
    $region31: #{tpu_custom_call.1} parent=1 // pred_check_branch
      %795 = sbr.rel (0) target = $region33
    $region32: #{tpu_custom_call.1} parent=1 // pred_region
      %s797 = ssub.s32 2048, 2048
      %798 = vsyncadd [#allocation4], %s797
      %s799 = sshll.u32 [#allocation8], 4
      %s800 = int_to_ptr.vmem [resolvable:$true] %s799
      %805 = dma.vmem_to_hbm [thread:$0]  %s800, 2048, %s4, [#allocation4], 128, 128, 8
    $region33: #{tpu_custom_call.1} parent=1 // pred_fallthru
      _
    // Predicated region
    $region34: #{tpu_custom_call.1} parent=1 // pred_check
      _
    $region35: #{tpu_custom_call.1} parent=1 // pred_check_branch
      %807 = sbr.rel (0) target = $region37
    $region36: #{tpu_custom_call.1} parent=1 // pred_region
      %808 = dma.done [#allocation4], 2048
    $region37: #{tpu_custom_call.1} parent=1 // pred_fallthru
      _
    %809 = vsyncpa [#allocation3], 1
    %810 = vsyncpa [#allocation6], 1
    %811 = vsyncpa [#allocation4], 1

</llo_original>
